<compile_context>
chip_gen: v7x
topology: tpu7x:2x2x1
jax: 0.10.0
libtpu: 0.0.40
codegen_flags: <defaults>
</compile_context>

<pallas_src>
import jax
import jax.numpy as jnp
from jax.experimental import pallas as pl
from jax.experimental.pallas import tpu as pltpu


# --------------------------- GAT layer kernel ---------------------------------

def make_gat_layer_kernel(heads, out_c):
    """One GAT layer: BN(relu(fc(GATConv(x)))), flash-tiled over (dst, src)."""
    H, C = heads, out_c
    HC = H * C

    def kernel(occ_ref,                       # scalar prefetch: block occupancy
               xd_ref, xs_ref, mb_ref,        # x (dst view), x (src view), mask
               wcat_ref, wf_ref, vec_ref,     # packed weights / fc weight / vectors
               o_ref,                         # [blk_d, C] output tile
               adst_s, m_s, l_s, acc_s):      # VMEM scratch
        i = pl.program_id(0)
        j = pl.program_id(1)

        # ---- per-dst-block init (once, at first src block) --------------------
        @pl.when(j == 0)
        def _init():
            xd = xd_ref[...].astype(jnp.bfloat16)
            # dst attention scores: x_dst @ (W @ a_dst) + bias  -> [blk_d, H]
            adst_s[...] = (jnp.dot(xd, wcat_ref[:, HC + H:],
                                   preferred_element_type=jnp.float32)
                           + vec_ref[0:1, HC + H:])
            # finite very-negative init (NOT -inf) keeps exp(m_prev - m_new)
            # well defined for rows whose first occupied block is fully masked.
            m_s[...] = jnp.full(m_s.shape, -1e30, jnp.float32)
            l_s[...] = jnp.zeros(l_s.shape, jnp.float32)
            acc_s[...] = jnp.zeros(acc_s.shape, jnp.float32)

        # ---- streamed src block (skipped when no edges hit this tile) ---------
        @pl.when(occ_ref[i, j] > 0)
        def _block():
            xs = xs_ref[...].astype(jnp.bfloat16)
            # one matmul gives hw_src | a_src (packed weights, bf16 MXU, f32 acc)
            tmp = (jnp.dot(xs, wcat_ref[:, :HC + H],
                           preferred_element_type=jnp.float32)
                   + vec_ref[0:1, :HC + H])
            hw_src = tmp[:, :HC].astype(jnp.bfloat16)          # [blk_s, H*C]
            # one small [blk_s, H] -> [H, blk_s] relayout per src block
            # (all heads at once; keeps src scores lane-resident per head).
            a_src = jnp.transpose(tmp[:, HC:HC + H])           # [H, blk_s]
            mb = mb_ref[...].astype(jnp.float32)               # 0 / -inf additive
            adst = adst_s[...]

            for h in range(H):                                 # H is tiny & static
                e = adst[:, h:h + 1] + a_src[h:h + 1, :]       # [blk_d, blk_s]
                e = jnp.where(e > 0.0, e, 0.2 * e) + mb        # LeakyReLU + mask
                m_prev = m_s[h]                                 # [blk_d, 1]
                m_new = jnp.maximum(m_prev, jnp.max(e, axis=-1, keepdims=True))
                corr = jnp.exp(m_prev - m_new)
                p = jnp.exp(e - m_new)                          # masked -> exactly 0
                l_s[h] = corr * l_s[h] + jnp.sum(p, axis=-1, keepdims=True)
                acc_s[h] = corr * acc_s[h] + jnp.dot(
                    p.astype(jnp.bfloat16), hw_src[:, h * C:(h + 1) * C],
                    preferred_element_type=jnp.float32)
                m_s[h] = m_new

        # ---- finalize: fc over concatenated heads, relu, folded BN ------------
        @pl.when(j == pl.num_programs(1) - 1)
        def _fin():
            # exact normalization (review: avoid approx reciprocal for parity)
            gat = jnp.concatenate([acc_s[h] / l_s[h] for h in range(H)], axis=1)
            out = jnp.dot(gat.astype(jnp.bfloat16), wf_ref[...],
                          preferred_element_type=jnp.float32)   # K = H*C matmul
            out = jnp.maximum(out + vec_ref[1:2, :C], 0.0)      # relu(fc(.)+fused b)
            o_ref[...] = out * vec_ref[2:3, :C] + vec_ref[3:4, :C]  # eval BN

    return kernel


def gat_layer_call(x, maskb, occ, stage, heads, out_c, blk_d, blk_s):
    N, Din = x.shape
    H, C = heads, out_c
    HC2 = H * C + 2 * H
    n_d, n_s = N // blk_d, N // blk_s

    gs = pltpu.PrefetchScalarGridSpec(
        num_scalar_prefetch=1,
        grid=(n_d, n_s),
        in_specs=[
            pl.BlockSpec((blk_d, Din), lambda i, j, occ_r: (i, 0)),   # x (dst)
            pl.BlockSpec((blk_s, Din), lambda i, j, occ_r: (j, 0)),   # x (src)
            pl.BlockSpec((blk_d, blk_s), lambda i, j, occ_r: (i, j)), # mask tile
            pl.BlockSpec((Din, HC2), lambda i, j, occ_r: (0, 0)),     # packed W
            pl.BlockSpec((H * C, C), lambda i, j, occ_r: (0, 0)),     # fc weight
            pl.BlockSpec((8, HC2), lambda i, j, occ_r: (0, 0)),       # packed vecs
        ],
        out_specs=pl.BlockSpec((blk_d, C), lambda i, j, occ_r: (i, 0)),
        scratch_shapes=[
            pltpu.VMEM((blk_d, H), jnp.float32),      # dst attention scores
            pltpu.VMEM((H, blk_d, 1), jnp.float32),   # running max
            pltpu.VMEM((H, blk_d, 1), jnp.float32),   # running sum
            pltpu.VMEM((H, blk_d, C), jnp.float32),   # per-head accumulators
        ],
    )
    return pl.pallas_call(
        make_gat_layer_kernel(H, C),
        out_shape=jax.ShapeDtypeStruct((N, C), jnp.float32),
        grid_spec=gs,
        compiler_params=pltpu.CompilerParams(
            # dst blocks split across TensorCores on v7x; no-op on v5e/v6e.
            dimension_semantics=("parallel", "arbitrary"),
            vmem_limit_bytes=64 * 1024 * 1024),
    )(occ, x, x, maskb, stage["wcat"], stage["wf"], stage["vec"])


# --------------------------- edge-head kernel ----------------------------------

def make_head_kernel(n_pairs):
    """y = fc(x[node_id[0]] * x[node_id[1]]) using SMEM ids + row gathers."""

    def kernel(nid_ref, x_ref, w_ref, b_ref, o_ref, prod_s):
        prod_s[...] = jnp.zeros(prod_s.shape, jnp.float32)
        for t in range(n_pairs):                       # tiny static loop
            i1 = nid_ref[t]
            i2 = nid_ref[n_pairs + t]
            prod_s[pl.ds(t, 1), :] = (x_ref[pl.ds(i1, 1), :] *
                                      x_ref[pl.ds(i2, 1), :])
        o_ref[...] = (jnp.dot(prod_s[...].astype(jnp.bfloat16), w_ref[...],
                              preferred_element_type=jnp.float32) + b_ref[...])

    return kernel


# --------------------------- host-side folding ---------------------------------

def fold_gat_stage(conv, fc, bn, heads, out_c, pre_w=None, pre_b=None):
    """Fold (optional preceding linear) + GAT linear + attention projections +
    fc/GAT bias + eval-mode BN into packed kernel operands."""
    H, C = heads, out_c
    HC = H * C
    wg = conv["w"]                                   # [Din0, H*C]
    if pre_w is not None:                            # fold init_x into layer 1
        wg_eff = pre_w @ wg
        hb = pre_b @ wg
    else:
        wg_eff = wg
        hb = jnp.zeros((1, HC), jnp.float32)

    a_src = jnp.zeros((HC, H), jnp.float32)          # block-diagonal projections
    a_dst = jnp.zeros((HC, H), jnp.float32)
    for h in range(H):
        a_src = a_src.at[h * C:(h + 1) * C, h].set(conv["att_src"][h])
        a_dst = a_dst.at[h * C:(h + 1) * C, h].set(conv["att_dst"][h])
    asrc_proj, adst_proj = wg_eff @ a_src, wg_eff @ a_dst     # [Din, H]
    asrc_b, adst_b = hb @ a_src, hb @ a_dst                    # [1, H]

    w_fc, b_fc = fc
    fb = conv["bias"] @ w_fc + b_fc                   # GAT bias folded through fc
    scale = bn["gamma"] * jax.lax.rsqrt(bn["var"] + 1e-5)      # eval-mode BN fold
    shift = bn["beta"] - bn["mean"] * scale

    wcat = jnp.concatenate([wg_eff, asrc_proj, adst_proj],
                           axis=1).astype(jnp.bfloat16)        # [Din, HC+2H]
    VW = HC + 2 * H
    vec = jnp.zeros((8, VW), jnp.float32)
    vec = vec.at[0, :VW].set(jnp.concatenate([hb, asrc_b, adst_b], axis=1)[0])
    vec = vec.at[1, :C].set(fb[0])
    vec = vec.at[2, :C].set(scale[0])
    vec = vec.at[3, :C].set(shift[0])
    return dict(wcat=wcat, wf=w_fc.astype(jnp.bfloat16), vec=vec)


def _pick_block(n, cap, align):
    if n <= cap:
        return n
    b = cap
    while b >= align:
        if n % b == 0:
            return b
        b -= align
    return n


# --------------------------- parameters ----------------------------------------

def init_params(key, in_c, out_c, heads):
    ks = jax.random.split(key, 8)

    def lin(k, fi, fo):
        kw, kb = jax.random.split(k)
        s = 1.0 / (fi ** 0.5)
        return (jax.random.normal(kw, (fi, fo), jnp.float32) * s,
                jax.random.normal(kb, (1, fo), jnp.float32) * s)

    def gat(k, fi, fo, h):
        kw, ka, kd, kb = jax.random.split(k, 4)
        s = 1.0 / (fi ** 0.5)
        return dict(
            w=jax.random.normal(kw, (fi, h * fo), jnp.float32) * s,
            att_src=jax.random.normal(ka, (h, fo), jnp.float32) * s,
            att_dst=jax.random.normal(kd, (h, fo), jnp.float32) * s,
            bias=jax.random.normal(kb, (1, h * fo), jnp.float32) * s)

    def bn(k, f):
        kg, kb = jax.random.split(k)
        return dict(gamma=1.0 + 0.1 * jax.random.normal(kg, (1, f), jnp.float32),
                    beta=0.1 * jax.random.normal(kb, (1, f), jnp.float32),
                    mean=jnp.zeros((1, f), jnp.float32),
                    var=jnp.ones((1, f), jnp.float32))

    return dict(
        init_x=lin(ks[0], in_c, out_c),
        conv1=gat(ks[1], out_c, out_c, heads),
        conv2=gat(ks[2], out_c, out_c, heads),
        fc1=lin(ks[3], heads * out_c, out_c),
        fc2=lin(ks[4], heads * out_c, out_c),
        bn1=bn(ks[5], out_c),
        bn2=bn(ks[6], out_c),
        fc=lin(ks[7], out_c, 7),
    )


# --------------------------- forward --------------------------------------------

def dpd_gat_forward(params, x, edge_index, train_edge_id, heads, out_c):
    N, in_c = x.shape
    T = train_edge_id.shape[0]
    H, C = heads, out_c
    OUT_PAD = 128

    # Tile caps sized so the per-step working set stays <= ~32 MiB (v7x-safe).
    # On v7x (64 MiB VMEM) halve BLK_S_CAP; v5e/v6e can afford 2x larger blocks.
    blk_d = _pick_block(N, 256, 16)
    blk_s = _pick_block(N, 512, 128)
    n_d, n_s = N // blk_d, N // blk_s

    # Dense adjacency adj[dst, src] with self-loops.  NOTE: duplicate edges are
    # deduplicated here; a PyG multigraph would count each one in the softmax.
    adj = jnp.zeros((N, N), jnp.bool_)
    adj = adj.at[edge_index[1], edge_index[0]].set(True)
    adj = adj | jnp.eye(N, dtype=jnp.bool_)
    # bf16 additive mask (0 / -inf): half the HBM/VMEM of an f32 adjacency.
    maskb = jnp.where(adj, 0.0, -jnp.inf).astype(jnp.bfloat16)
    # Per-(dst block, src block) occupancy table (scalar-prefetched to SMEM).
    occ = jnp.any(adj.reshape(n_d, blk_d, n_s, blk_s),
                  axis=(1, 3)).astype(jnp.int32)

    wi, bi = params["init_x"]
    s1 = fold_gat_stage(params["conv1"], params["fc1"], params["bn1"], H, C,
                        pre_w=wi, pre_b=bi)
    s2 = fold_gat_stage(params["conv2"], params["fc2"], params["bn2"], H, C)

    h1 = gat_layer_call(x, maskb, occ, s1, H, C, blk_d, blk_s)
    h2 = gat_layer_call(h1, maskb, occ, s2, H, C, blk_d, blk_s)

    # TODO(synk): training-mode dropout not implemented (eval = identity).

    node_id = edge_index[:, train_edge_id]           # [2, T]
    nid = node_id.reshape(-1).astype(jnp.int32)      # row 0 ids, then row 1 ids

    w_out, b_out = params["fc"]
    w_out_p = (jnp.zeros((C, OUT_PAD), jnp.float32)
               .at[:, :7].set(w_out).astype(jnp.bfloat16))
    b_out_p = jnp.zeros((1, OUT_PAD), jnp.float32).at[:, :7].set(b_out)

    t_pad = ((T + 7) // 8) * 8
    gs = pltpu.PrefetchScalarGridSpec(
        num_scalar_prefetch=1, grid=(1,),
        in_specs=[pl.BlockSpec((N, C), lambda g, nid_r: (0, 0)),
                  pl.BlockSpec((C, OUT_PAD), lambda g, nid_r: (0, 0)),
                  pl.BlockSpec((1, OUT_PAD), lambda g, nid_r: (0, 0))],
        out_specs=pl.BlockSpec((t_pad, OUT_PAD), lambda g, nid_r: (0, 0)),
        scratch_shapes=[pltpu.VMEM((t_pad, C), jnp.float32)],
    )
    y_pad = pl.pallas_call(
        make_head_kernel(T),
        out_shape=jax.ShapeDtypeStruct((t_pad, OUT_PAD), jnp.float32),
        grid_spec=gs,
    )(nid, h2, w_out_p, b_out_p)
    return y_pad[:T, :7]


# --------------------------- main ------------------------------------------------

if __name__ == "__main__":
    key = jax.random.PRNGKey(0)
    in_c, out_c, heads = 32, 64, 2
    N, E, T = 16, 24, 8

    k1, k2, k3, k4 = jax.random.split(key, 4)
    x = jax.random.normal(k1, (N, in_c), jnp.float32)
    edge_index = jax.random.randint(k2, (2, E), 0, N, dtype=jnp.int32)
    train_edge_id = jax.random.randint(k3, (T,), 0, E, dtype=jnp.int32)
    params = init_params(k4, in_c, out_c, heads)

    y = dpd_gat_forward(params, x, edge_index, train_edge_id, heads, out_c)
    y = jax.block_until_ready(y)
    assert y.shape == (T, 7) and y.dtype == jnp.float32
    assert bool(jnp.all(jnp.isfinite(y)))
    print("KERNEL_OK")
</pallas_src>

<mosaic_0001>
module attributes {stable_mosaic.version = 11 : i64} {
  func.func @kernel(%arg0: i32, %arg1: i32, %arg2: memref<1x1xi32, #tpu.memory_space<smem>>, %arg3: memref<16x32xf32, #tpu.memory_space<vmem>>, %arg4: memref<16x32xf32, #tpu.memory_space<vmem>>, %arg5: memref<16x16xbf16, #tpu.memory_space<vmem>>, %arg6: memref<32x132xbf16, #tpu.memory_space<vmem>>, %arg7: memref<128x64xbf16, #tpu.memory_space<vmem>>, %arg8: memref<8x132xf32, #tpu.memory_space<vmem>>, %arg9: memref<16x64xf32, #tpu.memory_space<vmem>>, %arg10: memref<16x2xf32, #tpu.memory_space<vmem>>, %arg11: memref<2x16x1xf32, #tpu.memory_space<vmem>>, %arg12: memref<2x16x1xf32, #tpu.memory_space<vmem>>, %arg13: memref<2x16x64xf32, #tpu.memory_space<vmem>>) attributes {dimension_semantics = [#tpu.dimension_semantics<parallel>, #tpu.dimension_semantics<arbitrary>], iteration_bounds = array<i64: 1, 1>, scalar_prefetch = 1 : i64, scratch_operands = 4 : i64, tpu.core_type = #tpu.core_type<tc>, window_params = [{transform_indices = @transform_0, window_bounds = array<i64: 16, 32>}, {transform_indices = @transform_1, window_bounds = array<i64: 16, 32>}, {transform_indices = @transform_2, window_bounds = array<i64: 16, 16>}, {pipeline_mode = #tpu.pipeline_mode<synchronous>, transform_indices = @transform_3, window_bounds = array<i64: 32, 132>}, {pipeline_mode = #tpu.pipeline_mode<synchronous>, transform_indices = @transform_4, window_bounds = array<i64: 128, 64>}, {pipeline_mode = #tpu.pipeline_mode<synchronous>, transform_indices = @transform_5, window_bounds = array<i64: 8, 132>}, {transform_indices = @transform_6, window_bounds = array<i64: 16, 64>}]} {
    %c0_i32 = arith.constant 0 : i32
    %0 = arith.cmpi eq, %arg1, %c0_i32 : i32
    %1 = arith.extui %0 : i1 to i32
    %c0_i32_0 = arith.constant 0 : i32
    %2 = arith.cmpi ne, %1, %c0_i32_0 : i32
    scf.if %2 {
      %c0 = arith.constant 0 : index
      %c0_5 = arith.constant 0 : index
      %12 = vector.load %arg3[%c0, %c0_5] : memref<16x32xf32, #tpu.memory_space<vmem>>, vector<16x32xf32>
      %13 = arith.truncf %12 : vector<16x32xf32> to vector<16x32xbf16>
      %c0_6 = arith.constant 0 : index
      %c130 = arith.constant 130 : index
      %14 = vector.load %arg6[%c0_6, %c130] : memref<32x132xbf16, #tpu.memory_space<vmem>>, vector<32x2xbf16>
      %cst = arith.constant dense<0.000000e+00> : vector<16x2xf32>
      %15 = tpu.matmul %13, %14, %cst {dimension_numbers = #tpu.dot_dimension_numbers<[1], [0], [0], [1], [0, 0, 1, 1], [], []>} : vector<16x32xbf16>, vector<32x2xbf16>, vector<16x2xf32> -> vector<16x2xf32>
      %c0_7 = arith.constant 0 : index
      %c130_8 = arith.constant 130 : index
      %16 = vector.load %arg8[%c0_7, %c130_8] : memref<8x132xf32, #tpu.memory_space<vmem>>, vector<1x2xf32>
      %17 = vector.broadcast %16 : vector<1x2xf32> to vector<16x2xf32>
      %18 = arith.addf %15, %17 : vector<16x2xf32>
      %c0_9 = arith.constant 0 : index
      %c0_10 = arith.constant 0 : index
      %19 = vector.load %arg10[%c0_9, %c0_10] : memref<16x2xf32, #tpu.memory_space<vmem>>, vector<16x2xf32>
      tpu.vector_store %arg10[%c0_9, %c0_10], %18 {strides = array<i32>} : memref<16x2xf32, #tpu.memory_space<vmem>>, vector<16x2xf32>,
      %cst_11 = arith.constant -1.000000e+30 : f32
      %20 = vector.broadcast %cst_11 : f32 to vector<2x16x1xf32>
      %c0_12 = arith.constant 0 : index
      %c0_13 = arith.constant 0 : index
      %c0_14 = arith.constant 0 : index
      %21 = vector.load %arg11[%c0_12, %c0_13, %c0_14] : memref<2x16x1xf32, #tpu.memory_space<vmem>>, vector<2x16x1xf32>
      tpu.vector_store %arg11[%c0_12, %c0_13, %c0_14], %20 {strides = array<i32>} : memref<2x16x1xf32, #tpu.memory_space<vmem>>, vector<2x16x1xf32>,
      %cst_15 = arith.constant 0.000000e+00 : f32
      %22 = vector.broadcast %cst_15 : f32 to vector<2x16x1xf32>
      %c0_16 = arith.constant 0 : index
      %c0_17 = arith.constant 0 : index
      %c0_18 = arith.constant 0 : index
      %23 = vector.load %arg12[%c0_16, %c0_17, %c0_18] : memref<2x16x1xf32, #tpu.memory_space<vmem>>, vector<2x16x1xf32>
      tpu.vector_store %arg12[%c0_16, %c0_17, %c0_18], %22 {strides = array<i32>} : memref<2x16x1xf32, #tpu.memory_space<vmem>>, vector<2x16x1xf32>,
      %cst_19 = arith.constant 0.000000e+00 : f32
      %24 = vector.broadcast %cst_19 : f32 to vector<2x16x64xf32>
      %c0_20 = arith.constant 0 : index
      %c0_21 = arith.constant 0 : index
      %c0_22 = arith.constant 0 : index
      %25 = vector.load %arg13[%c0_20, %c0_21, %c0_22] : memref<2x16x64xf32, #tpu.memory_space<vmem>>, vector<2x16x64xf32>
      tpu.vector_store %arg13[%c0_20, %c0_21, %c0_22], %24 {strides = array<i32>} : memref<2x16x64xf32, #tpu.memory_space<vmem>>, vector<2x16x64xf32>,
    } else {
    }
    %3 = arith.index_cast %arg0 : i32 to index
    %4 = arith.index_cast %arg1 : i32 to index
    %5 = memref.load %arg2[%3, %4] : memref<1x1xi32, #tpu.memory_space<smem>>
    %c0_i32_1 = arith.constant 0 : i32
    %6 = arith.cmpi sgt, %5, %c0_i32_1 : i32
    %7 = arith.extui %6 : i1 to i32
    %c0_i32_2 = arith.constant 0 : i32
    %8 = arith.cmpi ne, %7, %c0_i32_2 : i32
    scf.if %8 {
      %c0 = arith.constant 0 : index
      %c0_5 = arith.constant 0 : index
      %12 = vector.load %arg4[%c0, %c0_5] : memref<16x32xf32, #tpu.memory_space<vmem>>, vector<16x32xf32>
      %13 = arith.truncf %12 : vector<16x32xf32> to vector<16x32xbf16>
      %c0_6 = arith.constant 0 : index
      %c0_7 = arith.constant 0 : index
      %14 = vector.load %arg6[%c0_6, %c0_7] : memref<32x132xbf16, #tpu.memory_space<vmem>>, vector<32x130xbf16>
      %cst = arith.constant dense<0.000000e+00> : vector<16x130xf32>
      %15 = tpu.matmul %13, %14, %cst {dimension_numbers = #tpu.dot_dimension_numbers<[1], [0], [0], [1], [0, 0, 1, 1], [], []>} : vector<16x32xbf16>, vector<32x130xbf16>, vector<16x130xf32> -> vector<16x130xf32>
      %c0_8 = arith.constant 0 : index
      %c0_9 = arith.constant 0 : index
      %16 = vector.load %arg8[%c0_8, %c0_9] : memref<8x132xf32, #tpu.memory_space<vmem>>, vector<1x130xf32>
      %17 = vector.broadcast %16 : vector<1x130xf32> to vector<16x130xf32>
      %18 = arith.addf %15, %17 : vector<16x130xf32>
      %19 = vector.extract_strided_slice %18 {offsets = [0, 0], sizes = [16, 128], strides = [1, 1]} : vector<16x130xf32> to vector<16x128xf32>
      %20 = arith.truncf %19 : vector<16x128xf32> to vector<16x128xbf16>
      %21 = vector.extract_strided_slice %18 {offsets = [0, 128], sizes = [16, 2], strides = [1, 1]} : vector<16x130xf32> to vector<16x2xf32>
      %22 = tpu.transpose %21, [1, 0] : vector<16x2xf32> -> vector<2x16xf32>
      %c0_10 = arith.constant 0 : index
      %c0_11 = arith.constant 0 : index
      %23 = vector.load %arg5[%c0_10, %c0_11] : memref<16x16xbf16, #tpu.memory_space<vmem>>, vector<16x16xbf16>
      %24 = arith.extf %23 : vector<16x16xbf16> to vector<16x16xf32>
      %c0_12 = arith.constant 0 : index
      %c0_13 = arith.constant 0 : index
      %25 = vector.load %arg10[%c0_12, %c0_13] : memref<16x2xf32, #tpu.memory_space<vmem>>, vector<16x2xf32>
      %26 = vector.extract_strided_slice %25 {offsets = [0, 0], sizes = [16, 1], strides = [1, 1]} : vector<16x2xf32> to vector<16x1xf32>
      %27 = vector.extract_strided_slice %22 {offsets = [0, 0], sizes = [1, 16], strides = [1, 1]} : vector<2x16xf32> to vector<1x16xf32>
      %28 = vector.broadcast %26 : vector<16x1xf32> to vector<16x16xf32>
      %29 = vector.broadcast %27 : vector<1x16xf32> to vector<16x16xf32>
      %30 = arith.addf %28, %29 : vector<16x16xf32>
      %cst_14 = arith.constant 0.000000e+00 : f32
      %31 = vector.broadcast %cst_14 : f32 to vector<16x16xf32>
      %32 = arith.cmpf ogt, %30, %31 : vector<16x16xf32>
      %cst_15 = arith.constant 2.000000e-01 : f32
      %33 = vector.broadcast %cst_15 : f32 to vector<16x16xf32>
      %34 = arith.mulf %33, %30 : vector<16x16xf32>
      %35 = arith.select %32, %30, %34 : vector<16x16xi1>, vector<16x16xf32>
      %36 = arith.addf %35, %24 : vector<16x16xf32>
      %c0_16 = arith.constant 0 : index
      %c0_17 = arith.constant 0 : index
      %c0_18 = arith.constant 0 : index
      %37 = vector.load %arg11[%c0_16, %c0_17, %c0_18] : memref<2x16x1xf32, #tpu.memory_space<vmem>>, vector<1x16x1xf32>
      %38 = vector.shape_cast %37 : vector<1x16x1xf32> to vector<16x1xf32>
      %cst_19 = arith.constant dense<0xFF800000> : vector<16xf32>
      %39 = vector.multi_reduction <maximumf>, %36, %cst_19 [1] : vector<16x16xf32> to vector<16xf32>
      %40 = vector.shape_cast %39 : vector<16xf32> to vector<16x1xf32>
      %41 = arith.maximumf %38, %40 : vector<16x1xf32>
      %42 = arith.subf %38, %41 : vector<16x1xf32>
      %43 = math.exp %42 : vector<16x1xf32>
      %44 = vector.broadcast %41 : vector<16x1xf32> to vector<16x16xf32>
      %45 = arith.subf %36, %44 : vector<16x16xf32>
      %46 = math.exp %45 : vector<16x16xf32>
      %c0_20 = arith.constant 0 : index
      %c0_21 = arith.constant 0 : index
      %c0_22 = arith.constant 0 : index
      %47 = vector.load %arg12[%c0_20, %c0_21, %c0_22] : memref<2x16x1xf32, #tpu.memory_space<vmem>>, vector<1x16x1xf32>
      %48 = vector.shape_cast %47 : vector<1x16x1xf32> to vector<16x1xf32>
      %49 = arith.mulf %43, %48 : vector<16x1xf32>
      %cst_23 = arith.constant dense<0.000000e+00> : vector<16xf32>
      %50 = vector.multi_reduction <add>, %46, %cst_23 [1] : vector<16x16xf32> to vector<16xf32>
      %51 = vector.shape_cast %50 : vector<16xf32> to vector<16x1xf32>
      %52 = arith.addf %49, %51 : vector<16x1xf32>
      %c0_24 = arith.constant 0 : index
      %c0_25 = arith.constant 0 : index
      %c0_26 = arith.constant 0 : index
      %53 = vector.load %arg12[%c0_24, %c0_25, %c0_26] : memref<2x16x1xf32, #tpu.memory_space<vmem>>, vector<1x16x1xf32>
      %54 = vector.shape_cast %53 : vector<1x16x1xf32> to vector<16x1xf32>
      %55 = vector.shape_cast %52 : vector<16x1xf32> to vector<1x16x1xf32>
      tpu.vector_store %arg12[%c0_24, %c0_25, %c0_26], %55 {strides = array<i32>} : memref<2x16x1xf32, #tpu.memory_space<vmem>>, vector<1x16x1xf32>,
      %c0_27 = arith.constant 0 : index
      %c0_28 = arith.constant 0 : index
      %c0_29 = arith.constant 0 : index
      %56 = vector.load %arg13[%c0_27, %c0_28, %c0_29] : memref<2x16x64xf32, #tpu.memory_space<vmem>>, vector<1x16x64xf32>
      %57 = vector.shape_cast %56 : vector<1x16x64xf32> to vector<16x64xf32>
      %58 = vector.broadcast %43 : vector<16x1xf32> to vector<16x64xf32>
      %59 = arith.mulf %58, %57 : vector<16x64xf32>
      %60 = arith.truncf %46 : vector<16x16xf32> to vector<16x16xbf16>
      %61 = vector.extract_strided_slice %20 {offsets = [0, 0], sizes = [16, 64], strides = [1, 1]} : vector<16x128xbf16> to vector<16x64xbf16>
      %cst_30 = arith.constant dense<0.000000e+00> : vector<16x64xf32>
      %62 = tpu.matmul %60, %61, %cst_30 {dimension_numbers = #tpu.dot_dimension_numbers<[1], [0], [0], [1], [0, 0, 1, 1], [], []>} : vector<16x16xbf16>, vector<16x64xbf16>, vector<16x64xf32> -> vector<16x64xf32>
      %63 = arith.addf %59, %62 : vector<16x64xf32>
      %c0_31 = arith.constant 0 : index
      %c0_32 = arith.constant 0 : index
      %c0_33 = arith.constant 0 : index
      %64 = vector.load %arg13[%c0_31, %c0_32, %c0_33] : memref<2x16x64xf32, #tpu.memory_space<vmem>>, vector<1x16x64xf32>
      %65 = vector.shape_cast %64 : vector<1x16x64xf32> to vector<16x64xf32>
      %66 = vector.shape_cast %63 : vector<16x64xf32> to vector<1x16x64xf32>
      tpu.vector_store %arg13[%c0_31, %c0_32, %c0_33], %66 {strides = array<i32>} : memref<2x16x64xf32, #tpu.memory_space<vmem>>, vector<1x16x64xf32>,
      %c0_34 = arith.constant 0 : index
      %c0_35 = arith.constant 0 : index
      %c0_36 = arith.constant 0 : index
      %67 = vector.load %arg11[%c0_34, %c0_35, %c0_36] : memref<2x16x1xf32, #tpu.memory_space<vmem>>, vector<1x16x1xf32>
      %68 = vector.shape_cast %67 : vector<1x16x1xf32> to vector<16x1xf32>
      %69 = vector.shape_cast %41 : vector<16x1xf32> to vector<1x16x1xf32>
      tpu.vector_store %arg11[%c0_34, %c0_35, %c0_36], %69 {strides = array<i32>} : memref<2x16x1xf32, #tpu.memory_space<vmem>>, vector<1x16x1xf32>,
      %70 = vector.extract_strided_slice %25 {offsets = [0, 1], sizes = [16, 1], strides = [1, 1]} : vector<16x2xf32> to vector<16x1xf32>
      %71 = vector.extract_strided_slice %22 {offsets = [1, 0], sizes = [1, 16], strides = [1, 1]} : vector<2x16xf32> to vector<1x16xf32>
      %72 = vector.broadcast %70 : vector<16x1xf32> to vector<16x16xf32>
      %73 = vector.broadcast %71 : vector<1x16xf32> to vector<16x16xf32>
      %74 = arith.addf %72, %73 : vector<16x16xf32>
      %cst_37 = arith.constant 0.000000e+00 : f32
      %75 = vector.broadcast %cst_37 : f32 to vector<16x16xf32>
      %76 = arith.cmpf ogt, %74, %75 : vector<16x16xf32>
      %cst_38 = arith.constant 2.000000e-01 : f32
      %77 = vector.broadcast %cst_38 : f32 to vector<16x16xf32>
      %78 = arith.mulf %77, %74 : vector<16x16xf32>
      %79 = arith.select %76, %74, %78 : vector<16x16xi1>, vector<16x16xf32>
      %80 = arith.addf %79, %24 : vector<16x16xf32>
      %c1 = arith.constant 1 : index
      %c0_39 = arith.constant 0 : index
      %c0_40 = arith.constant 0 : index
      %81 = vector.load %arg11[%c1, %c0_39, %c0_40] : memref<2x16x1xf32, #tpu.memory_space<vmem>>, vector<1x16x1xf32>
      %82 = vector.shape_cast %81 : vector<1x16x1xf32> to vector<16x1xf32>
      %cst_41 = arith.constant dense<0xFF800000> : vector<16xf32>
      %83 = vector.multi_reduction <maximumf>, %80, %cst_41 [1] : vector<16x16xf32> to vector<16xf32>
      %84 = vector.shape_cast %83 : vector<16xf32> to vector<16x1xf32>
      %85 = arith.maximumf %82, %84 : vector<16x1xf32>
      %86 = arith.subf %82, %85 : vector<16x1xf32>
      %87 = math.exp %86 : vector<16x1xf32>
      %88 = vector.broadcast %85 : vector<16x1xf32> to vector<16x16xf32>
      %89 = arith.subf %80, %88 : vector<16x16xf32>
      %90 = math.exp %89 : vector<16x16xf32>
      %c1_42 = arith.constant 1 : index
      %c0_43 = arith.constant 0 : index
      %c0_44 = arith.constant 0 : index
      %91 = vector.load %arg12[%c1_42, %c0_43, %c0_44] : memref<2x16x1xf32, #tpu.memory_space<vmem>>, vector<1x16x1xf32>
      %92 = vector.shape_cast %91 : vector<1x16x1xf32> to vector<16x1xf32>
      %93 = arith.mulf %87, %92 : vector<16x1xf32>
      %cst_45 = arith.constant dense<0.000000e+00> : vector<16xf32>
      %94 = vector.multi_reduction <add>, %90, %cst_45 [1] : vector<16x16xf32> to vector<16xf32>
      %95 = vector.shape_cast %94 : vector<16xf32> to vector<16x1xf32>
      %96 = arith.addf %93, %95 : vector<16x1xf32>
      %c1_46 = arith.constant 1 : index
      %c0_47 = arith.constant 0 : index
      %c0_48 = arith.constant 0 : index
      %97 = vector.load %arg12[%c1_46, %c0_47, %c0_48] : memref<2x16x1xf32, #tpu.memory_space<vmem>>, vector<1x16x1xf32>
      %98 = vector.shape_cast %97 : vector<1x16x1xf32> to vector<16x1xf32>
      %99 = vector.shape_cast %96 : vector<16x1xf32> to vector<1x16x1xf32>
      tpu.vector_store %arg12[%c1_46, %c0_47, %c0_48], %99 {strides = array<i32>} : memref<2x16x1xf32, #tpu.memory_space<vmem>>, vector<1x16x1xf32>,
      %c1_49 = arith.constant 1 : index
      %c0_50 = arith.constant 0 : index
      %c0_51 = arith.constant 0 : index
      %100 = vector.load %arg13[%c1_49, %c0_50, %c0_51] : memref<2x16x64xf32, #tpu.memory_space<vmem>>, vector<1x16x64xf32>
      %101 = vector.shape_cast %100 : vector<1x16x64xf32> to vector<16x64xf32>
      %102 = vector.broadcast %87 : vector<16x1xf32> to vector<16x64xf32>
      %103 = arith.mulf %102, %101 : vector<16x64xf32>
      %104 = arith.truncf %90 : vector<16x16xf32> to vector<16x16xbf16>
      %105 = vector.extract_strided_slice %20 {offsets = [0, 64], sizes = [16, 64], strides = [1, 1]} : vector<16x128xbf16> to vector<16x64xbf16>
      %cst_52 = arith.constant dense<0.000000e+00> : vector<16x64xf32>
      %106 = tpu.matmul %104, %105, %cst_52 {dimension_numbers = #tpu.dot_dimension_numbers<[1], [0], [0], [1], [0, 0, 1, 1], [], []>} : vector<16x16xbf16>, vector<16x64xbf16>, vector<16x64xf32> -> vector<16x64xf32>
      %107 = arith.addf %103, %106 : vector<16x64xf32>
      %c1_53 = arith.constant 1 : index
      %c0_54 = arith.constant 0 : index
      %c0_55 = arith.constant 0 : index
      %108 = vector.load %arg13[%c1_53, %c0_54, %c0_55] : memref<2x16x64xf32, #tpu.memory_space<vmem>>, vector<1x16x64xf32>
      %109 = vector.shape_cast %108 : vector<1x16x64xf32> to vector<16x64xf32>
      %110 = vector.shape_cast %107 : vector<16x64xf32> to vector<1x16x64xf32>
      tpu.vector_store %arg13[%c1_53, %c0_54, %c0_55], %110 {strides = array<i32>} : memref<2x16x64xf32, #tpu.memory_space<vmem>>, vector<1x16x64xf32>,
      %c1_56 = arith.constant 1 : index
      %c0_57 = arith.constant 0 : index
      %c0_58 = arith.constant 0 : index
      %111 = vector.load %arg11[%c1_56, %c0_57, %c0_58] : memref<2x16x1xf32, #tpu.memory_space<vmem>>, vector<1x16x1xf32>
      %112 = vector.shape_cast %111 : vector<1x16x1xf32> to vector<16x1xf32>
      %113 = vector.shape_cast %85 : vector<16x1xf32> to vector<1x16x1xf32>
      tpu.vector_store %arg11[%c1_56, %c0_57, %c0_58], %113 {strides = array<i32>} : memref<2x16x1xf32, #tpu.memory_space<vmem>>, vector<1x16x1xf32>,
    } else {
    }
    %c0_i32_3 = arith.constant 0 : i32
    %9 = arith.cmpi eq, %arg1, %c0_i32_3 : i32
    %10 = arith.extui %9 : i1 to i32
    %c0_i32_4 = arith.constant 0 : i32
    %11 = arith.cmpi ne, %10, %c0_i32_4 : i32
    scf.if %11 {
      %c0 = arith.constant 0 : index
      %c0_5 = arith.constant 0 : index
      %c0_6 = arith.constant 0 : index
      %12 = vector.load %arg13[%c0, %c0_5, %c0_6] : memref<2x16x64xf32, #tpu.memory_space<vmem>>, vector<1x16x64xf32>
      %13 = vector.shape_cast %12 : vector<1x16x64xf32> to vector<16x64xf32>
      %c0_7 = arith.constant 0 : index
      %c0_8 = arith.constant 0 : index
      %c0_9 = arith.constant 0 : index
      %14 = vector.load %arg12[%c0_7, %c0_8, %c0_9] : memref<2x16x1xf32, #tpu.memory_space<vmem>>, vector<1x16x1xf32>
      %15 = vector.shape_cast %14 : vector<1x16x1xf32> to vector<16x1xf32>
      %16 = vector.broadcast %15 : vector<16x1xf32> to vector<16x64xf32>
      %17 = arith.divf %13, %16 : vector<16x64xf32>
      %c1 = arith.constant 1 : index
      %c0_10 = arith.constant 0 : index
      %c0_11 = arith.constant 0 : index
      %18 = vector.load %arg13[%c1, %c0_10, %c0_11] : memref<2x16x64xf32, #tpu.memory_space<vmem>>, vector<1x16x64xf32>
      %19 = vector.shape_cast %18 : vector<1x16x64xf32> to vector<16x64xf32>
      %c1_12 = arith.constant 1 : index
      %c0_13 = arith.constant 0 : index
      %c0_14 = arith.constant 0 : index
      %20 = vector.load %arg12[%c1_12, %c0_13, %c0_14] : memref<2x16x1xf32, #tpu.memory_space<vmem>>, vector<1x16x1xf32>
      %21 = vector.shape_cast %20 : vector<1x16x1xf32> to vector<16x1xf32>
      %22 = vector.broadcast %21 : vector<16x1xf32> to vector<16x64xf32>
      %23 = arith.divf %19, %22 : vector<16x64xf32>
      %24 = tpu.concatenate %17, %23 in 1 : vector<16x64xf32>, vector<16x64xf32> -> vector<16x128xf32>
      %25 = arith.truncf %24 : vector<16x128xf32> to vector<16x128xbf16>
      %c0_15 = arith.constant 0 : index
      %c0_16 = arith.constant 0 : index
      %26 = vector.load %arg7[%c0_15, %c0_16] : memref<128x64xbf16, #tpu.memory_space<vmem>>, vector<128x64xbf16>
      %cst = arith.constant dense<0.000000e+00> : vector<16x64xf32>
      %27 = tpu.matmul %25, %26, %cst {dimension_numbers = #tpu.dot_dimension_numbers<[1], [0], [0], [1], [0, 0, 1, 1], [], []>} : vector<16x128xbf16>, vector<128x64xbf16>, vector<16x64xf32> -> vector<16x64xf32>
      %c1_17 = arith.constant 1 : index
      %c0_18 = arith.constant 0 : index
      %28 = vector.load %arg8[%c1_17, %c0_18] : memref<8x132xf32, #tpu.memory_space<vmem>>, vector<1x64xf32>
      %29 = vector.broadcast %28 : vector<1x64xf32> to vector<16x64xf32>
      %30 = arith.addf %27, %29 : vector<16x64xf32>
      %cst_19 = arith.constant 0.000000e+00 : f32
      %31 = vector.broadcast %cst_19 : f32 to vector<16x64xf32>
      %32 = arith.maximumf %30, %31 : vector<16x64xf32>
      %c2 = arith.constant 2 : index
      %c0_20 = arith.constant 0 : index
      %33 = vector.load %arg8[%c2, %c0_20] : memref<8x132xf32, #tpu.memory_space<vmem>>, vector<1x64xf32>
      %34 = vector.broadcast %33 : vector<1x64xf32> to vector<16x64xf32>
      %35 = arith.mulf %32, %34 : vector<16x64xf32>
      %c3 = arith.constant 3 : index
      %c0_21 = arith.constant 0 : index
      %36 = vector.load %arg8[%c3, %c0_21] : memref<8x132xf32, #tpu.memory_space<vmem>>, vector<1x64xf32>
      %37 = vector.broadcast %36 : vector<1x64xf32> to vector<16x64xf32>
      %38 = arith.addf %35, %37 : vector<16x64xf32>
      %c0_22 = arith.constant 0 : index
      %c0_23 = arith.constant 0 : index
      %39 = vector.load %arg9[%c0_22, %c0_23] : memref<16x64xf32, #tpu.memory_space<vmem>>, vector<16x64xf32>
      tpu.vector_store %arg9[%c0_22, %c0_23], %38 {strides = array<i32>} : memref<16x64xf32, #tpu.memory_space<vmem>>, vector<16x64xf32>,
    } else {
    }
    return
  }
  func.func @transform_0(%arg0: i32, %arg1: i32, %arg2: memref<1x1xi32, #tpu.memory_space<smem>>) -> (i32, i32) {
    %c0_i32 = arith.constant 0 : i32
    %c0_i32_0 = arith.constant 0 : i32
    return %arg0, %c0_i32 : i32, i32
  }
  func.func @transform_1(%arg0: i32, %arg1: i32, %arg2: memref<1x1xi32, #tpu.memory_space<smem>>) -> (i32, i32) {
    %c0_i32 = arith.constant 0 : i32
    %c0_i32_0 = arith.constant 0 : i32
    return %arg1, %c0_i32 : i32, i32
  }
  func.func @transform_2(%arg0: i32, %arg1: i32, %arg2: memref<1x1xi32, #tpu.memory_space<smem>>) -> (i32, i32) {
    %c0_i32 = arith.constant 0 : i32
    return %arg0, %arg1 : i32, i32
  }
  func.func @transform_3(%arg0: i32, %arg1: i32, %arg2: memref<1x1xi32, #tpu.memory_space<smem>>) -> (i32, i32) {
    %c0_i32 = arith.constant 0 : i32
    %c0_i32_0 = arith.constant 0 : i32
    %c0_i32_1 = arith.constant 0 : i32
    return %c0_i32, %c0_i32_0 : i32, i32
  }
  func.func @transform_4(%arg0: i32, %arg1: i32, %arg2: memref<1x1xi32, #tpu.memory_space<smem>>) -> (i32, i32) {
    %c0_i32 = arith.constant 0 : i32
    %c0_i32_0 = arith.constant 0 : i32
    %c0_i32_1 = arith.constant 0 : i32
    return %c0_i32, %c0_i32_0 : i32, i32
  }
  func.func @transform_5(%arg0: i32, %arg1: i32, %arg2: memref<1x1xi32, #tpu.memory_space<smem>>) -> (i32, i32) {
    %c0_i32 = arith.constant 0 : i32
    %c0_i32_0 = arith.constant 0 : i32
    %c0_i32_1 = arith.constant 0 : i32
    return %c0_i32, %c0_i32_0 : i32, i32
  }
  func.func @transform_6(%arg0: i32, %arg1: i32, %arg2: memref<1x1xi32, #tpu.memory_space<smem>>) -> (i32, i32) {
    %c0_i32 = arith.constant 0 : i32
    %c0_i32_0 = arith.constant 0 : i32
    return %arg0, %c0_i32 : i32, i32
  }
}

</mosaic_0001>

<llo_original>
// kernel: tpu_custom_call.1
$region0: #{tpu_custom_call.1}
  #allocation0 [shape = 'u32[]', space=smem, size = 0x4, offset = 0x4, fixed_abs, tag = 'smem constant byte address 0x4 - core index']
  #allocation1 [shape = 'u32[144,128]{1,0:T(1,128)}', space=vmem, size = 0x12000, scoped, tag = 'internal scratch']
  #allocation2 [shape = 'f32[16,2]{1,0:T(8,128)}', space=vmem, size = 0x2000, scoped, tag = 'scratch operand']
  #allocation3 [shape = 'f32[2,16,1]{2,1,0:T(8,128)}', space=vmem, size = 0x4000, scoped, tag = 'scratch operand']
  #allocation4 [shape = 'f32[2,16,1]{2,1,0:T(8,128)}', space=vmem, size = 0x4000, scoped, tag = 'scratch operand']
  #allocation5 [shape = 'f32[2,16,64]{2,1,0:T(8,128)}', space=vmem, size = 0x4000, scoped, tag = 'scratch operand']
  #allocation6 [shape = 's32[1]{0}', space=sflag, size = 0x4, scoped, tag = 'scoped memory for tpu_custom_call.1']
  #allocation7 [shape = 's32[1,1]{1,0:T(1,128)S(6)}', space=smem, size = 0x200, scoped, tag = 'prefetched SMEM operand 0']
  %s0 = inlined_call_operand.<no memory space> [shape: s32[1,1], index: 0, kind: input, shape index: {}]
  %s1 = inlined_call_operand.hbm [shape: f32[16,32], index: 1, kind: input, shape index: {}]
  %s2 = inlined_call_operand.hbm [shape: f32[16,32], index: 2, kind: input, shape index: {}]
  %s3 = inlined_call_operand.hbm [shape: bf16[16,16], index: 3, kind: input, shape index: {}]
  %s4 = inlined_call_operand.hbm [shape: bf16[32,132], index: 4, kind: input, shape index: {}]
  %s5 = inlined_call_operand.hbm [shape: bf16[128,64], index: 5, kind: input, shape index: {}]
  %s6 = inlined_call_operand.hbm [shape: f32[8,132], index: 6, kind: input, shape index: {}]
  %s7 = inlined_call_operand.hbm [shape: f32[16,64], index: 7, kind: output, shape index: {}]
  %s8 = sld [smem:[#allocation0]]
  $region70: #{tpu_custom_call.1} parent=0
    _
  %s10 = ssub.s32 1, %s8
  %s11 = scalar_select 0, %s10, %s8
  %12 = sst [smem:[#allocation7]] %s0
  $region1: #{tpu_custom_call.1} parent=0
    #allocation8 [shape = 'u8[8192]{0}', space=vmem, size = 0x2000, scoped, tag = 'input window, operand 1, single buffered']
    #allocation9 [shape = 's32[1]{0}', space=sflag, size = 0x4, scoped, tag = 'scoped memory for tpu_custom_call.1']
    #allocation10 [shape = 's32[1]{0}', space=sflag, size = 0x4, scoped, tag = 'scoped memory for tpu_custom_call.1']
    #allocation11 [shape = 'u8[8192]{0}', space=vmem, size = 0x2000, scoped, tag = 'input window, operand 2, single buffered']
    #allocation12 [shape = 's32[1]{0}', space=sflag, size = 0x4, scoped, tag = 'scoped memory for tpu_custom_call.1']
    #allocation13 [shape = 'u8[4096]{0}', space=vmem, size = 0x1000, scoped, tag = 'input window, operand 3, single buffered']
    #allocation14 [shape = 'u8[16384]{0}', space=vmem, size = 0x4000, scoped, tag = 'input window, operand 4, single buffered']
    #allocation15 [shape = 's32[1]{0}', space=sflag, size = 0x4, scoped, tag = 'scoped memory for tpu_custom_call.1']
    #allocation16 [shape = 'u8[32768]{0}', space=vmem, size = 0x8000, scoped, tag = 'input window, operand 5, single buffered']
    #allocation17 [shape = 'u8[8192]{0}', space=vmem, size = 0x2000, scoped, tag = 'input window, operand 6, single buffered']
    #allocation18 [shape = 's32[1]{0}', space=sflag, size = 0x4, scoped, tag = 'scoped memory for tpu_custom_call.1']
    #allocation19 [shape = 'u8[8192]{0}', space=vmem, size = 0x2000, scoped, tag = 'output window, operand 0, single buffered']
    %13 = vsyncpa [#allocation9], 0
    %14 = vsyncpa [#allocation12], 0
    %15 = vsyncpa [#allocation15], 0
    %16 = vsyncpa [#allocation18], 0
    %17 = vsyncpa [#allocation10], 0
    // Predicated region
    $region2: #{tpu_custom_call.1} parent=1 // pred_check
      _
    $region3: #{tpu_custom_call.1} parent=1 // pred_check_branch
      %19 = sbr.rel (0) target = $region5
    $region4: #{tpu_custom_call.1} parent=1 // pred_region
      %s21 = ssub.s32 256, 256
      %22 = vsyncadd [#allocation9], %s21
      %s23 = sshll.u32 [#allocation8], 4
      %s24 = int_to_ptr.vmem [resolvable:$true] %s23
      %29 = dma.hbm_to_vmem [thread:$0]  %s1, 256, %s24, [#allocation9], 128, 128, 8
    $region5: #{tpu_custom_call.1} parent=1 // pred_fallthru
      _
    // Predicated region
    $region6: #{tpu_custom_call.1} parent=1 // pred_check
      _
    $region7: #{tpu_custom_call.1} parent=1 // pred_check_branch
      %31 = sbr.rel (0) target = $region9
    $region8: #{tpu_custom_call.1} parent=1 // pred_region
      %s33 = ssub.s32 256, 256
      %34 = vsyncadd [#allocation12], %s33
      %s35 = sshll.u32 [#allocation11], 4
      %s36 = int_to_ptr.vmem [resolvable:$true] %s35
      %41 = dma.hbm_to_vmem [thread:$0]  %s2, 256, %s36, [#allocation12], 128, 128, 8
    $region9: #{tpu_custom_call.1} parent=1 // pred_fallthru
      _
    // Predicated region
    $region10: #{tpu_custom_call.1} parent=1 // pred_check
      _
    $region11: #{tpu_custom_call.1} parent=1 // pred_check_branch
      %43 = sbr.rel (0) target = $region13
    $region12: #{tpu_custom_call.1} parent=1 // pred_region
      %s45 = ssub.s32 128, 128
      %46 = vsyncadd [#allocation12], %s45
      %s47 = sshll.u32 [#allocation13], 4
      %s48 = int_to_ptr.vmem [resolvable:$true] %s47
      %53 = dma.hbm_to_vmem [thread:$0]  %s3, 128, %s48, [#allocation12], 64, 64, 4
    $region13: #{tpu_custom_call.1} parent=1 // pred_fallthru
      _
    // Predicated region
    $region14: #{tpu_custom_call.1} parent=1 // pred_check
      _
    $region15: #{tpu_custom_call.1} parent=1 // pred_check_branch
      %55 = sbr.rel (0) target = $region17
    $region16: #{tpu_custom_call.1} parent=1 // pred_region
      %s57 = ssub.s32 512, 512
      %58 = vsyncadd [#allocation15], %s57
      %s59 = sshll.u32 [#allocation14], 4
      %s60 = int_to_ptr.vmem [resolvable:$true] %s59
      %65 = dma.hbm_to_vmem [thread:$0]  %s4, 512, %s60, [#allocation15], 128, 128, 8
    $region17: #{tpu_custom_call.1} parent=1 // pred_fallthru
      _
    // Predicated region
    $region18: #{tpu_custom_call.1} parent=1 // pred_check
      _
    $region19: #{tpu_custom_call.1} parent=1 // pred_check_branch
      %67 = sbr.rel (0) target = $region21
    $region20: #{tpu_custom_call.1} parent=1 // pred_region
      %s69 = ssub.s32 1024, 1024
      %70 = vsyncadd [#allocation15], %s69
      %s71 = sshll.u32 [#allocation16], 4
      %s72 = int_to_ptr.vmem [resolvable:$true] %s71
      %77 = dma.hbm_to_vmem [thread:$0]  %s5, 1024, %s72, [#allocation15], 64, 64, 4
    $region21: #{tpu_custom_call.1} parent=1 // pred_fallthru
      _
    // Predicated region
    $region22: #{tpu_custom_call.1} parent=1 // pred_check
      _
    $region23: #{tpu_custom_call.1} parent=1 // pred_check_branch
      %79 = sbr.rel (0) target = $region25
    $region24: #{tpu_custom_call.1} parent=1 // pred_region
      %s81 = ssub.s32 256, 256
      %82 = vsyncadd [#allocation18], %s81
      %s84 = sshll.u32 [#allocation17], 4
      %s85 = int_to_ptr.vmem [resolvable:$true] %s84
      %87 = dma.hbm_to_vmem [thread:$0]  %s6, 256, %s85, [#allocation18]
    $region25: #{tpu_custom_call.1} parent=1 // pred_fallthru
      _
    // Predicated region
    $region26: #{tpu_custom_call.1} parent=1 // pred_check
      _
    $region27: #{tpu_custom_call.1} parent=1 // pred_check_branch
      %89 = sbr.rel (0) target = $region29
    $region28: #{tpu_custom_call.1} parent=1 // pred_region
      %90 = dma.done [#allocation9], 256
    $region29: #{tpu_custom_call.1} parent=1 // pred_fallthru
      _
    // Predicated region
    $region30: #{tpu_custom_call.1} parent=1 // pred_check
      _
    $region31: #{tpu_custom_call.1} parent=1 // pred_check_branch
      %92 = sbr.rel (0) target = $region33
    $region32: #{tpu_custom_call.1} parent=1 // pred_region
      %93 = dma.done [#allocation12], 256
    $region33: #{tpu_custom_call.1} parent=1 // pred_fallthru
      _
    // Predicated region
    $region34: #{tpu_custom_call.1} parent=1 // pred_check
      _
    $region35: #{tpu_custom_call.1} parent=1 // pred_check_branch
      %95 = sbr.rel (0) target = $region37
    $region36: #{tpu_custom_call.1} parent=1 // pred_region
      %96 = dma.done [#allocation12], 128
    $region37: #{tpu_custom_call.1} parent=1 // pred_fallthru
      _
    // Predicated region
    $region38: #{tpu_custom_call.1} parent=1 // pred_check
      _
    $region39: #{tpu_custom_call.1} parent=1 // pred_check_branch
      %98 = sbr.rel (0) target = $region41
    $region40: #{tpu_custom_call.1} parent=1 // pred_region
      %99 = dma.done [#allocation15], 512
    $region41: #{tpu_custom_call.1} parent=1 // pred_fallthru
      _
    // Predicated region
    $region42: #{tpu_custom_call.1} parent=1 // pred_check
      _
    $region43: #{tpu_custom_call.1} parent=1 // pred_check_branch
      %101 = sbr.rel (0) target = $region45
    $region44: #{tpu_custom_call.1} parent=1 // pred_region
      %102 = dma.done [#allocation15], 1024
    $region45: #{tpu_custom_call.1} parent=1 // pred_fallthru
      _
    // Predicated region
    $region46: #{tpu_custom_call.1} parent=1 // pred_check
      _
    $region47: #{tpu_custom_call.1} parent=1 // pred_check_branch
      %104 = sbr.rel (0) target = $region49
    $region48: #{tpu_custom_call.1} parent=1 // pred_region
      %105 = dma.done [#allocation18], 256
    $region49: #{tpu_custom_call.1} parent=1 // pred_fallthru
      _
    %p107 = scmp.eq.s32.totalorder 0, 0
    // Predicated region
    $region50: #{tpu_custom_call.1} parent=1 // pred_check
      %p108 = pneg %p107
    $region51: #{tpu_custom_call.1} parent=1 // pred_check_branch
      %110 = sbr.rel (%p108) target = $region53
    $region52: #{tpu_custom_call.1} parent=1 // pred_region
      %v111 = vld [vmem:[#allocation8] sm:$0xff]
      %v112 = vld [vmem:[#allocation8 + $0x8] sm:$0xff]
      %v113 = vpack.c.bf16 %v112, %v111
      %v114 = vld [vmem:[#allocation14 + $0x4] sm:$0xf]
      %v115 = vld [vmem:[#allocation14 + $0xc] sm:$0xf]
      %v116 = vld [vmem:[#allocation14 + $0x14] sm:$0xf]
      %v117 = vld [vmem:[#allocation14 + $0x1c] sm:$0xf]
      %v118 = vld [vmem:[#allocation17 + $0x8] ss:$0 sm:$0xff]
      %v123 = vunpack.c.l.b16 %v114
      %v124 = vunpack.c.l.b16 %v115
      %v125 = vunpack.c.l.b16 %v116
      %v126 = vunpack.c.l.b16 %v117
      %v127 = vpack.c.b16 %v124, %v123
      %v128 = vpack.c.b16 %v126, %v125
      %129 = vrot.lane.b32.xlu0 %v127, 126
      %v130 = vpop.permute.xlu0 %129
      %131 = vrot.lane.b32.xlu0 %v128, 126
      %v132 = vpop.permute.xlu0 %131
      %136 = vrot.lane.b32.xlu0 %v118, 126
      %v137 = vpop.permute.xlu0 %136
      %vm139 = vcmask 261120
      %v141 = vsel %vm139, %v113, 0
      %143 = vmatprep.subr.bf16.mxu0 0
      %144 = vmatpush1.bf16.msra.mxu0 %v130
      %145 = vmatprep.subr.bf16.mxu0 0
      %146 = vmatpush1.bf16.msra.mxu0 %v132
      %147 = vmatprep.subr.bf16.mxu0 0
      %148 = vmatpush1.bf16.msra.mxu0 0
      %149 = vmatprep.subr.bf16.mxu0 0
      %150 = vmatpush1.bf16.msra.mxu0 0
      %151 = vmatprep.subr.bf16.mxu0 0
      %152 = vmatpush1.bf16.msra.mxu0 0
      %153 = vmatprep.subr.bf16.mxu0 0
      %154 = vmatpush1.bf16.msra.mxu0 0
      %155 = vmatprep.subr.bf16.mxu0 0
      %156 = vmatpush1.bf16.msra.mxu0 0
      %157 = vmatprep.subr.bf16.mxu0 0
      %158 = vmatpush1.bf16.msra.mxu0 0
      %159 = vmatprep.subr.bf16.mxu0 0
      %160 = vmatpush1.bf16.msra.mxu0 0
      %161 = vmatprep.subr.bf16.mxu0 0
      %162 = vmatpush1.bf16.msra.mxu0 0
      %163 = vmatprep.subr.bf16.mxu0 0
      %164 = vmatpush1.bf16.msra.mxu0 0
      %165 = vmatprep.subr.bf16.mxu0 0
      %166 = vmatpush1.bf16.msra.mxu0 0
      %167 = vmatprep.subr.bf16.mxu0 0
      %168 = vmatpush1.bf16.msra.mxu0 0
      %169 = vmatprep.subr.bf16.mxu0 0
      %170 = vmatpush1.bf16.msra.mxu0 0
      %171 = vmatprep.subr.bf16.mxu0 0
      %172 = vmatpush1.bf16.msra.mxu0 0
      %173 = vmatprep.subr.bf16.mxu0 0
      %174 = vmatpush1.bf16.msra.mxu0 0
      %175 = vmatprep.mubr.bf16.mxu0 0
      %176 = vmatmul.mubr.bf16.gmra.mrb[0].mxu0 %v141
      %v177 = vpop.f32.mrb[0].mxu0
      %v178 = vadd.f32 %v137, %v177
      %v179 = vpop.f32.mrb[0].mxu0
      %v180 = vpop.f32.mrb[0].mxu0
      %v181 = vadd.f32 %v137, %v180
      %v182 = vpop.f32.mrb[0].mxu0
      %183 = vdwg.mxu0
      %vm184 = vcmask 15360
      %185 = vst.msk [vmem:[#allocation2] sm:$0xff] %vm184, %v178
      %186 = vst.msk [vmem:[#allocation2 + $0x8] sm:$0xff] %vm184, %v181
      %vm187 = vcmask 7168
      %188 = vst.msk [vmem:[#allocation3] sm:$0xff] %vm187, -1e+30
      %189 = vst.msk [vmem:[#allocation3 + $0x8] sm:$0xff] %vm187, -1e+30
      %190 = vst.msk [vmem:[#allocation3 + $0x10] sm:$0xff] %vm187, -1e+30
      %191 = vst.msk [vmem:[#allocation3 + $0x18] sm:$0xff] %vm187, -1e+30
      %192 = vst.msk [vmem:[#allocation4] sm:$0xff] %vm187, 0.0
      %193 = vst.msk [vmem:[#allocation4 + $0x8] sm:$0xff] %vm187, 0.0
      %194 = vst.msk [vmem:[#allocation4 + $0x10] sm:$0xff] %vm187, 0.0
      %195 = vst.msk [vmem:[#allocation4 + $0x18] sm:$0xff] %vm187, 0.0
      %vm196 = vcmask 523264
      %197 = vst.msk [vmem:[#allocation5] sm:$0xff] %vm196, 0.0
      %198 = vst.msk [vmem:[#allocation5 + $0x8] sm:$0xff] %vm196, 0.0
      %199 = vst.msk [vmem:[#allocation5 + $0x10] sm:$0xff] %vm196, 0.0
      %200 = vst.msk [vmem:[#allocation5 + $0x18] sm:$0xff] %vm196, 0.0
    $region53: #{tpu_custom_call.1} parent=1 // pred_fallthru
      _
    %s201 = sadd.s32 0, 0
    %s202 = smul.u32 %s201, 128
    %s203 = sadd.s32 %s202, 0
    %s204 = sld [smem:[#allocation7 + %s203]]
    %p205 = scmp.gt.s32.totalorder %s204, 0
    // Predicated region
    $region54: #{tpu_custom_call.1} parent=1 // pred_check
      %p206 = pneg %p205
    $region55: #{tpu_custom_call.1} parent=1 // pred_check_branch
      %208 = sbr.rel (%p206) target = $region57
    $region56: #{tpu_custom_call.1} parent=1 // pred_region
      %v209 = vld [vmem:[#allocation11] sm:$0xff]
      %v210 = vld [vmem:[#allocation11 + $0x8] sm:$0xff]
      %v211 = vpack.c.bf16 %v210, %v209
      %v212 = vld [vmem:[#allocation14] sm:$0xff]
      %v213 = vld [vmem:[#allocation14 + $0x8] sm:$0xff]
      %v214 = vld [vmem:[#allocation14 + $0x10] sm:$0xff]
      %v215 = vld [vmem:[#allocation14 + $0x18] sm:$0xff]
      %v216 = vld [vmem:[#allocation17] ss:$8 sm:$0x3]
      %v218 = vlaneseq
      %v219 = vshrl.u32 %v218, 7
      %v220 = vsub.s32 0, %v219
      %v221 = vrot.slane %v216, %v220
      %v222 = vlaneseq
      %v223 = vshrl.u32 %v222, 7
      %v224 = vsub.s32 1, %v223
      %v225 = vrot.slane %v216, %v224
      %v232 = vunpack.c.l.b16 %v212
      %v233 = vunpack.c.h.b16 %v212
      %v234 = vunpack.c.l.b16 %v213
      %v235 = vunpack.c.h.b16 %v213
      %v236 = vunpack.c.l.b16 %v214
      %v237 = vunpack.c.h.b16 %v214
      %v238 = vunpack.c.l.b16 %v215
      %v239 = vunpack.c.h.b16 %v215
      %v240 = vpack.c.b16 %v234, %v232
      %v241 = vpack.c.b16 %v235, %v233
      %v242 = vpack.c.b16 %v238, %v236
      %v243 = vpack.c.b16 %v239, %v237
      %vm248 = vcmask 261120
      %v250 = vsel %vm248, %v211, 0
      %252 = vmatprep.subr.bf16.mxu0 %v241
      %253 = vmatpush1.bf16.msra.mxu0 %v240
      %254 = vmatprep.subr.bf16.mxu0 %v243
      %255 = vmatpush1.bf16.msra.mxu0 %v242
      %256 = vmatprep.subr.bf16.mxu0 0
      %257 = vmatpush1.bf16.msra.mxu0 0
      %258 = vmatprep.subr.bf16.mxu0 0
      %259 = vmatpush1.bf16.msra.mxu0 0
      %260 = vmatprep.subr.bf16.mxu0 0
      %261 = vmatpush1.bf16.msra.mxu0 0
      %262 = vmatprep.subr.bf16.mxu0 0
      %263 = vmatpush1.bf16.msra.mxu0 0
      %264 = vmatprep.subr.bf16.mxu0 0
      %265 = vmatpush1.bf16.msra.mxu0 0
      %266 = vmatprep.subr.bf16.mxu0 0
      %267 = vmatpush1.bf16.msra.mxu0 0
      %268 = vmatprep.subr.bf16.mxu0 0
      %269 = vmatpush1.bf16.msra.mxu0 0
      %270 = vmatprep.subr.bf16.mxu0 0
      %271 = vmatpush1.bf16.msra.mxu0 0
      %272 = vmatprep.subr.bf16.mxu0 0
      %273 = vmatpush1.bf16.msra.mxu0 0
      %274 = vmatprep.subr.bf16.mxu0 0
      %275 = vmatpush1.bf16.msra.mxu0 0
      %276 = vmatprep.subr.bf16.mxu0 0
      %277 = vmatpush1.bf16.msra.mxu0 0
      %278 = vmatprep.subr.bf16.mxu0 0
      %279 = vmatpush1.bf16.msra.mxu0 0
      %280 = vmatprep.subr.bf16.mxu0 0
      %281 = vmatpush1.bf16.msra.mxu0 0
      %282 = vmatprep.subr.bf16.mxu0 0
      %283 = vmatpush1.bf16.msra.mxu0 0
      %284 = vmatprep.mubr.bf16.mxu0 0
      %285 = vmatmul.mubr.bf16.gmra.mrb[0].mxu0 %v250
      %v286 = vpop.f32.mrb[0].mxu0
      %v287 = vadd.f32 %v221, %v286
      %v288 = vpop.f32.mrb[0].mxu0
      %v289 = vadd.f32 %v225, %v288
      %v290 = vpop.f32.mrb[0].mxu0
      %v291 = vadd.f32 %v221, %v290
      %v292 = vpop.f32.mrb[0].mxu0
      %v293 = vadd.f32 %v225, %v292
      %294 = vdwg.mxu0
      %v295 = vpack.c.bf16 %v291, %v287
      %296 = vxpose.xlu0.b32.start [1/16] %v289, 128
      %297 = vxpose.xlu0.b32.cont [2/16] %v293, 128
      %298 = vxpose.xlu0.b32.cont [3/16] 0.0, 128
      %299 = vxpose.xlu0.b32.cont [4/16] 0.0, 128
      %300 = vxpose.xlu0.b32.cont [5/16] 0.0, 128
      %301 = vxpose.xlu0.b32.cont [6/16] 0.0, 128
      %302 = vxpose.xlu0.b32.cont [7/16] 0.0, 128
      %303 = vxpose.xlu0.b32.cont [8/16] 0.0, 128
      %304 = vxpose.xlu0.b32.cont [9/16] 0.0, 128
      %305 = vxpose.xlu0.b32.cont [10/16] 0.0, 128
      %306 = vxpose.xlu0.b32.cont [11/16] 0.0, 128
      %307 = vxpose.xlu0.b32.cont [12/16] 0.0, 128
      %308 = vxpose.xlu0.b32.cont [13/16] 0.0, 128
      %309 = vxpose.xlu0.b32.cont [14/16] 0.0, 128
      %310 = vxpose.xlu0.b32.cont [15/16] 0.0, 128
      %311 = vxpose.xlu0.b32.end [16/16] 0.0, 128
      %v312 = vpop.trf.xlu0
      %v313 = vpop.trf.xlu0
      %v314 = vpop.trf.xlu0
      %v315 = vpop.trf.xlu0
      %v316 = vpop.trf.xlu0
      %v317 = vpop.trf.xlu0
      %v318 = vpop.trf.xlu0
      %v319 = vpop.trf.xlu0
      %v320 = vpop.trf.xlu0
      %v321 = vpop.trf.xlu0
      %v322 = vpop.trf.xlu0
      %v323 = vpop.trf.xlu0
      %v324 = vpop.trf.xlu0
      %v325 = vpop.trf.xlu0
      %v326 = vpop.trf.xlu0
      %v327 = vpop.trf.xlu0
      %v328 = vld [vmem:[#allocation13] sm:$0xf]
      %v329 = vld [vmem:[#allocation13 + $0x4] sm:$0xf]
      %v330 = vunpack.c.l.bf16 %v328
      %v331 = vunpack.c.l.bf16 %v329
      %v332 = vld [vmem:[#allocation2] sm:$0xff]
      %v333 = vld [vmem:[#allocation2 + $0x8] sm:$0xff]
      %335 = vset.pattern.permute.xlu0 0
      %336 = vperm.xlu0 %335, %v332
      %v337 = vpop.permute.xlu0 %336
      %340 = vset.pattern.permute.xlu0 0
      %341 = vperm.xlu0 %340, %v333
      %v342 = vpop.permute.xlu0 %341
      %v344 = vlaneseq
      %v345 = vshrl.u32 %v344, 7
      %v346 = vsub.s32 0, %v345
      %v347 = vrot.slane %v312, %v346
      %v348 = vadd.f32 %v337, %v347
      %v349 = vadd.f32 %v342, %v347
      %vm350 = vcmp.gt.f32.partialorder %v348, 0.0
      %vm351 = vcmp.gt.f32.partialorder %v349, 0.0
      %v352 = vmul.f32 %v348, 0.2
      %v353 = vmul.f32 %v349, 0.2
      %v354 = vsel %vm350, %v348, %v352
      %v355 = vsel %vm351, %v349, %v353
      %v356 = vadd.f32 %v354, %v330
      %v357 = vadd.f32 %v355, %v331
      %v358 = vld [vmem:[#allocation3] sm:$0xff]
      %v359 = vld [vmem:[#allocation3 + $0x8] sm:$0xff]
      %vm360 = vcmask 130048
      %v361 = vsel %vm360, %v356, -inf
      %362 = vmax.xlane.f32.xlu0 %v361
      %v363 = vpop.xlane.xlu0 %362
      %v364 = vsel %vm360, %v357, -inf
      %365 = vmax.xlane.f32.xlu0 %v364
      %v366 = vpop.xlane.xlu0 %365
      %v367 = vmax.f32 %v358, %v363
      %v368 = vmax.f32 %v359, %v366
      %v369 = vsub.f32 %v358, %v367
      %v370 = vsub.f32 %v359, %v368
      %v371 = vmul.f32 %v369, 1.442695
      %v372 = vpow.pop %v371
      %v373 = vmul.f32 %v370, 1.442695
      %v374 = vpow.pop %v373
      %376 = vset.pattern.permute.xlu0 0
      %377 = vperm.xlu0 %376, %v367
      %v378 = vpop.permute.xlu0 %377
      %381 = vset.pattern.permute.xlu0 0
      %382 = vperm.xlu0 %381, %v368
      %v383 = vpop.permute.xlu0 %382
      %v385 = vsub.f32 %v356, %v378
      %v386 = vsub.f32 %v357, %v383
      %v387 = vmul.f32 %v385, 1.442695
      %v388 = vpow.pop %v387
      %v389 = vmul.f32 %v386, 1.442695
      %v390 = vpow.pop %v389
      %v391 = vld [vmem:[#allocation4] sm:$0xff]
      %v392 = vld [vmem:[#allocation4 + $0x8] sm:$0xff]
      %v393 = vmul.f32 %v372, %v391
      %v394 = vmul.f32 %v374, %v392
      %v395 = vsel %vm360, %v388, 0.0
      %396 = vadd.xlane.f32.xlu0 %v395
      %v397 = vpop.xlane.xlu0 %396
      %v398 = vsel %vm360, %v390, 0.0
      %399 = vadd.xlane.f32.xlu0 %v398
      %v400 = vpop.xlane.xlu0 %399
      %v401 = vadd.f32 %v393, %v397
      %v402 = vadd.f32 %v394, %v400
      %vm403 = vcmask 7168
      %404 = vst.msk [vmem:[#allocation4] sm:$0xff] %vm403, %v401
      %405 = vst.msk [vmem:[#allocation4 + $0x8] sm:$0xff] %vm403, %v402
      %v406 = vld [vmem:[#allocation5] sm:$0xff]
      %v407 = vld [vmem:[#allocation5 + $0x8] sm:$0xff]
      %409 = vset.pattern.permute.xlu0 0
      %410 = vperm.xlu0 %409, %v372
      %v411 = vpop.permute.xlu0 %410
      %414 = vset.pattern.permute.xlu0 0
      %415 = vperm.xlu0 %414, %v374
      %v416 = vpop.permute.xlu0 %415
      %v418 = vmul.f32 %v411, %v406
      %v419 = vmul.f32 %v416, %v407
      %v420 = vpack.c.bf16 %v390, %v388
      %v422 = vsel %vm360, %v420, 0
      %424 = vmatprep.subr.bf16.mxu0 0
      %425 = vmatpush1.bf16.msra.mxu0 %v295
      %426 = vmatprep.subr.bf16.mxu0 0
      %427 = vmatpush1.bf16.msra.mxu0 0
      %428 = vmatprep.subr.bf16.mxu0 0
      %429 = vmatpush1.bf16.msra.mxu0 0
      %430 = vmatprep.subr.bf16.mxu0 0
      %431 = vmatpush1.bf16.msra.mxu0 0
      %432 = vmatprep.subr.bf16.mxu0 0
      %433 = vmatpush1.bf16.msra.mxu0 0
      %434 = vmatprep.subr.bf16.mxu0 0
      %435 = vmatpush1.bf16.msra.mxu0 0
      %436 = vmatprep.subr.bf16.mxu0 0
      %437 = vmatpush1.bf16.msra.mxu0 0
      %438 = vmatprep.subr.bf16.mxu0 0
      %439 = vmatpush1.bf16.msra.mxu0 0
      %440 = vmatprep.subr.bf16.mxu0 0
      %441 = vmatpush1.bf16.msra.mxu0 0
      %442 = vmatprep.subr.bf16.mxu0 0
      %443 = vmatpush1.bf16.msra.mxu0 0
      %444 = vmatprep.subr.bf16.mxu0 0
      %445 = vmatpush1.bf16.msra.mxu0 0
      %446 = vmatprep.subr.bf16.mxu0 0
      %447 = vmatpush1.bf16.msra.mxu0 0
      %448 = vmatprep.subr.bf16.mxu0 0
      %449 = vmatpush1.bf16.msra.mxu0 0
      %450 = vmatprep.subr.bf16.mxu0 0
      %451 = vmatpush1.bf16.msra.mxu0 0
      %452 = vmatprep.subr.bf16.mxu0 0
      %453 = vmatpush1.bf16.msra.mxu0 0
      %454 = vmatprep.subr.bf16.mxu0 0
      %455 = vmatpush1.bf16.msra.mxu0 0
      %456 = vmatprep.mubr.bf16.mxu0 0
      %457 = vmatmul.mubr.bf16.gmra.mrb[0].mxu0 %v422
      %v458 = vpop.f32.mrb[0].mxu0
      %v459 = vadd.f32 0.0, %v458
      %v460 = vpop.f32.mrb[0].mxu0
      %v461 = vpop.f32.mrb[0].mxu0
      %v462 = vadd.f32 0.0, %v461
      %v463 = vpop.f32.mrb[0].mxu0
      %464 = vdwg.mxu0
      %v465 = vadd.f32 %v418, %v459
      %v466 = vadd.f32 %v419, %v462
      %vm467 = vcmask 523264
      %468 = vst.msk [vmem:[#allocation5] sm:$0xff] %vm467, %v465
      %469 = vst.msk [vmem:[#allocation5 + $0x8] sm:$0xff] %vm467, %v466
      %470 = vst.msk [vmem:[#allocation3] sm:$0xff] %vm403, %v367
      %471 = vst.msk [vmem:[#allocation3 + $0x8] sm:$0xff] %vm403, %v368
      %472 = vset.pattern.permute.xlu0 1
      %473 = vperm.xlu0 %472, %v332
      %v474 = vpop.permute.xlu0 %473
      %476 = vset.pattern.permute.xlu0 1
      %477 = vperm.xlu0 %476, %v333
      %v478 = vpop.permute.xlu0 %477
      %v480 = vlaneseq
      %v481 = vshrl.u32 %v480, 7
      %v482 = vsub.s32 1, %v481
      %v483 = vrot.slane %v312, %v482
      %v484 = vadd.f32 %v474, %v483
      %v485 = vadd.f32 %v478, %v483
      %vm486 = vcmp.gt.f32.partialorder %v484, 0.0
      %vm487 = vcmp.gt.f32.partialorder %v485, 0.0
      %v488 = vmul.f32 %v484, 0.2
      %v489 = vmul.f32 %v485, 0.2
      %v490 = vsel %vm486, %v484, %v488
      %v491 = vsel %vm487, %v485, %v489
      %v492 = vadd.f32 %v490, %v330
      %v493 = vadd.f32 %v491, %v331
      %s494 = scalar_lea.vmem [#allocation3], 16
      %v495 = vld [vmem:[%s494] sm:$0xff]
      %v496 = vld [vmem:[%s494 + $0x8] sm:$0xff]
      %v497 = vsel %vm360, %v492, -inf
      %498 = vmax.xlane.f32.xlu0 %v497
      %v499 = vpop.xlane.xlu0 %498
      %v500 = vsel %vm360, %v493, -inf
      %501 = vmax.xlane.f32.xlu0 %v500
      %v502 = vpop.xlane.xlu0 %501
      %v503 = vmax.f32 %v495, %v499
      %v504 = vmax.f32 %v496, %v502
      %v505 = vsub.f32 %v495, %v503
      %v506 = vsub.f32 %v496, %v504
      %v507 = vmul.f32 %v505, 1.442695
      %v508 = vpow.pop %v507
      %v509 = vmul.f32 %v506, 1.442695
      %v510 = vpow.pop %v509
      %512 = vset.pattern.permute.xlu0 0
      %513 = vperm.xlu0 %512, %v503
      %v514 = vpop.permute.xlu0 %513
      %517 = vset.pattern.permute.xlu0 0
      %518 = vperm.xlu0 %517, %v504
      %v519 = vpop.permute.xlu0 %518
      %v521 = vsub.f32 %v492, %v514
      %v522 = vsub.f32 %v493, %v519
      %v523 = vmul.f32 %v521, 1.442695
      %v524 = vpow.pop %v523
      %v525 = vmul.f32 %v522, 1.442695
      %v526 = vpow.pop %v525
      %s527 = scalar_lea.vmem [#allocation4], 16
      %v528 = vld [vmem:[%s527] sm:$0xff]
      %v529 = vld [vmem:[%s527 + $0x8] sm:$0xff]
      %v530 = vmul.f32 %v508, %v528
      %v531 = vmul.f32 %v510, %v529
      %v532 = vsel %vm360, %v524, 0.0
      %533 = vadd.xlane.f32.xlu0 %v532
      %v534 = vpop.xlane.xlu0 %533
      %v535 = vsel %vm360, %v526, 0.0
      %536 = vadd.xlane.f32.xlu0 %v535
      %v537 = vpop.xlane.xlu0 %536
      %v538 = vadd.f32 %v530, %v534
      %v539 = vadd.f32 %v531, %v537
      %540 = vst.msk [vmem:[%s527] sm:$0xff] %vm403, %v538
      %541 = vst.msk [vmem:[%s527 + $0x8] sm:$0xff] %vm403, %v539
      %s542 = scalar_lea.vmem [#allocation5], 16
      %v543 = vld [vmem:[%s542] sm:$0xff]
      %v544 = vld [vmem:[%s542 + $0x8] sm:$0xff]
      %546 = vset.pattern.permute.xlu0 0
      %547 = vperm.xlu0 %546, %v508
      %v548 = vpop.permute.xlu0 %547
      %551 = vset.pattern.permute.xlu0 0
      %552 = vperm.xlu0 %551, %v510
      %v553 = vpop.permute.xlu0 %552
      %v555 = vmul.f32 %v548, %v543
      %v556 = vmul.f32 %v553, %v544
      %v557 = vpack.c.bf16 %v526, %v524
      %559 = vrot.lane.b32.xlu0 %v295, 64
      %v560 = vpop.permute.xlu0 %559
      %v563 = vsel %vm360, %v557, 0
      %565 = vmatprep.subr.bf16.mxu0 0
      %566 = vmatpush1.bf16.msra.mxu0 %v560
      %567 = vmatprep.subr.bf16.mxu0 0
      %568 = vmatpush1.bf16.msra.mxu0 0
      %569 = vmatprep.subr.bf16.mxu0 0
      %570 = vmatpush1.bf16.msra.mxu0 0
      %571 = vmatprep.subr.bf16.mxu0 0
      %572 = vmatpush1.bf16.msra.mxu0 0
      %573 = vmatprep.subr.bf16.mxu0 0
      %574 = vmatpush1.bf16.msra.mxu0 0
      %575 = vmatprep.subr.bf16.mxu0 0
      %576 = vmatpush1.bf16.msra.mxu0 0
      %577 = vmatprep.subr.bf16.mxu0 0
      %578 = vmatpush1.bf16.msra.mxu0 0
      %579 = vmatprep.subr.bf16.mxu0 0
      %580 = vmatpush1.bf16.msra.mxu0 0
      %581 = vmatprep.subr.bf16.mxu0 0
      %582 = vmatpush1.bf16.msra.mxu0 0
      %583 = vmatprep.subr.bf16.mxu0 0
      %584 = vmatpush1.bf16.msra.mxu0 0
      %585 = vmatprep.subr.bf16.mxu0 0
      %586 = vmatpush1.bf16.msra.mxu0 0
      %587 = vmatprep.subr.bf16.mxu0 0
      %588 = vmatpush1.bf16.msra.mxu0 0
      %589 = vmatprep.subr.bf16.mxu0 0
      %590 = vmatpush1.bf16.msra.mxu0 0
      %591 = vmatprep.subr.bf16.mxu0 0
      %592 = vmatpush1.bf16.msra.mxu0 0
      %593 = vmatprep.subr.bf16.mxu0 0
      %594 = vmatpush1.bf16.msra.mxu0 0
      %595 = vmatprep.subr.bf16.mxu0 0
      %596 = vmatpush1.bf16.msra.mxu0 0
      %597 = vmatprep.mubr.bf16.mxu0 0
      %598 = vmatmul.mubr.bf16.gmra.mrb[0].mxu0 %v563
      %v599 = vpop.f32.mrb[0].mxu0
      %v600 = vadd.f32 0.0, %v599
      %v601 = vpop.f32.mrb[0].mxu0
      %v602 = vpop.f32.mrb[0].mxu0
      %v603 = vadd.f32 0.0, %v602
      %v604 = vpop.f32.mrb[0].mxu0
      %605 = vdwg.mxu0
      %v606 = vadd.f32 %v555, %v600
      %v607 = vadd.f32 %v556, %v603
      %608 = vst.msk [vmem:[%s542] sm:$0xff] %vm467, %v606
      %609 = vst.msk [vmem:[%s542 + $0x8] sm:$0xff] %vm467, %v607
      %610 = vst.msk [vmem:[%s494] sm:$0xff] %vm403, %v503
      %611 = vst.msk [vmem:[%s494 + $0x8] sm:$0xff] %vm403, %v504
    $region57: #{tpu_custom_call.1} parent=1 // pred_fallthru
      _
    // Predicated region
    $region58: #{tpu_custom_call.1} parent=1 // pred_check
      %p612 = pneg %p107
    $region59: #{tpu_custom_call.1} parent=1 // pred_check_branch
      %614 = sbr.rel (%p612) target = $region61
    $region60: #{tpu_custom_call.1} parent=1 // pred_region
      %v615 = vld [vmem:[#allocation5] sm:$0xff]
      %v616 = vld [vmem:[#allocation5 + $0x8] sm:$0xff]
      %v617 = vld [vmem:[#allocation4] sm:$0xff]
      %v618 = vld [vmem:[#allocation4 + $0x8] sm:$0xff]
      %620 = vset.pattern.permute.xlu0 0
      %621 = vperm.xlu0 %620, %v617
      %v622 = vpop.permute.xlu0 %621
      %625 = vset.pattern.permute.xlu0 0
      %626 = vperm.xlu0 %625, %v618
      %v627 = vpop.permute.xlu0 %626
      %v629 = vrcp.pop %v622
      %v630 = vmul.f32 %v615, %v629
      %v631 = vrcp.pop %v627
      %v632 = vmul.f32 %v616, %v631
      %s633 = scalar_lea.vmem [#allocation5], 16
      %v634 = vld [vmem:[%s633] sm:$0xff]
      %v635 = vld [vmem:[%s633 + $0x8] sm:$0xff]
      %s636 = scalar_lea.vmem [#allocation4], 16
      %v637 = vld [vmem:[%s636] sm:$0xff]
      %v638 = vld [vmem:[%s636 + $0x8] sm:$0xff]
      %640 = vset.pattern.permute.xlu0 0
      %641 = vperm.xlu0 %640, %v637
      %v642 = vpop.permute.xlu0 %641
      %645 = vset.pattern.permute.xlu0 0
      %646 = vperm.xlu0 %645, %v638
      %v647 = vpop.permute.xlu0 %646
      %v649 = vrcp.pop %v642
      %v650 = vmul.f32 %v634, %v649
      %v651 = vrcp.pop %v647
      %v652 = vmul.f32 %v635, %v651
      %655 = vrot.lane.b32.xlu0 %v650, 64
      %v656 = vpop.permute.xlu0 %655
      %657 = vrot.lane.b32.xlu0 %v652, 64
      %v658 = vpop.permute.xlu0 %657
      %vm661 = vcmask 523264
      %v662 = vsel %vm661, %v630, %v656
      %v663 = vsel %vm661, %v632, %v658
      %v664 = vpack.c.bf16 %v663, %v662
      %v665 = vld [vmem:[#allocation16] sm:$0xf]
      %v666 = vld [vmem:[#allocation16 + $0x4] sm:$0xf]
      %v667 = vld [vmem:[#allocation16 + $0x8] sm:$0xf]
      %v668 = vld [vmem:[#allocation16 + $0xc] sm:$0xf]
      %v669 = vld [vmem:[#allocation16 + $0x10] sm:$0xf]
      %v670 = vld [vmem:[#allocation16 + $0x14] sm:$0xf]
      %v671 = vld [vmem:[#allocation16 + $0x18] sm:$0xf]
      %v672 = vld [vmem:[#allocation16 + $0x1c] sm:$0xf]
      %v673 = vld [vmem:[#allocation16 + $0x20] sm:$0xf]
      %v674 = vld [vmem:[#allocation16 + $0x24] sm:$0xf]
      %v675 = vld [vmem:[#allocation16 + $0x28] sm:$0xf]
      %v676 = vld [vmem:[#allocation16 + $0x2c] sm:$0xf]
      %v677 = vld [vmem:[#allocation16 + $0x30] sm:$0xf]
      %v678 = vld [vmem:[#allocation16 + $0x34] sm:$0xf]
      %v679 = vld [vmem:[#allocation16 + $0x38] sm:$0xf]
      %v680 = vld [vmem:[#allocation16 + $0x3c] sm:$0xf]
      %v681 = vld [vmem:[#allocation17 + $0x1] ss:$0 sm:$0xff]
      %v698 = vunpack.c.l.b16 %v665
      %v699 = vunpack.c.l.b16 %v666
      %v700 = vunpack.c.l.b16 %v667
      %v701 = vunpack.c.l.b16 %v668
      %v702 = vunpack.c.l.b16 %v669
      %v703 = vunpack.c.l.b16 %v670
      %v704 = vunpack.c.l.b16 %v671
      %v705 = vunpack.c.l.b16 %v672
      %v706 = vunpack.c.l.b16 %v673
      %v707 = vunpack.c.l.b16 %v674
      %v708 = vunpack.c.l.b16 %v675
      %v709 = vunpack.c.l.b16 %v676
      %v710 = vunpack.c.l.b16 %v677
      %v711 = vunpack.c.l.b16 %v678
      %v712 = vunpack.c.l.b16 %v679
      %v713 = vunpack.c.l.b16 %v680
      %v714 = vpack.c.b16 %v699, %v698
      %v715 = vpack.c.b16 %v701, %v700
      %v716 = vpack.c.b16 %v703, %v702
      %v717 = vpack.c.b16 %v705, %v704
      %v718 = vpack.c.b16 %v707, %v706
      %v719 = vpack.c.b16 %v709, %v708
      %v720 = vpack.c.b16 %v711, %v710
      %v721 = vpack.c.b16 %v713, %v712
      %730 = vmatprep.subr.bf16.mxu0 0
      %731 = vmatpush1.bf16.msra.mxu0 %v714
      %732 = vmatprep.subr.bf16.mxu0 0
      %733 = vmatpush1.bf16.msra.mxu0 %v715
      %734 = vmatprep.subr.bf16.mxu0 0
      %735 = vmatpush1.bf16.msra.mxu0 %v716
      %736 = vmatprep.subr.bf16.mxu0 0
      %737 = vmatpush1.bf16.msra.mxu0 %v717
      %738 = vmatprep.subr.bf16.mxu0 0
      %739 = vmatpush1.bf16.msra.mxu0 %v718
      %740 = vmatprep.subr.bf16.mxu0 0
      %741 = vmatpush1.bf16.msra.mxu0 %v719
      %742 = vmatprep.subr.bf16.mxu0 0
      %743 = vmatpush1.bf16.msra.mxu0 %v720
      %744 = vmatprep.subr.bf16.mxu0 0
      %745 = vmatpush1.bf16.msra.mxu0 %v721
      %746 = vmatprep.subr.bf16.mxu0 0
      %747 = vmatpush1.bf16.msra.mxu0 0
      %748 = vmatprep.subr.bf16.mxu0 0
      %749 = vmatpush1.bf16.msra.mxu0 0
      %750 = vmatprep.subr.bf16.mxu0 0
      %751 = vmatpush1.bf16.msra.mxu0 0
      %752 = vmatprep.subr.bf16.mxu0 0
      %753 = vmatpush1.bf16.msra.mxu0 0
      %754 = vmatprep.subr.bf16.mxu0 0
      %755 = vmatpush1.bf16.msra.mxu0 0
      %756 = vmatprep.subr.bf16.mxu0 0
      %757 = vmatpush1.bf16.msra.mxu0 0
      %758 = vmatprep.subr.bf16.mxu0 0
      %759 = vmatpush1.bf16.msra.mxu0 0
      %760 = vmatprep.subr.bf16.mxu0 0
      %761 = vmatpush1.bf16.msra.mxu0 0
      %762 = vmatprep.mubr.bf16.mxu0 0
      %763 = vmatmul.mubr.bf16.gmra.mrb[0].mxu0 %v664
      %v764 = vpop.f32.mrb[0].mxu0
      %v765 = vadd.f32 %v681, %v764
      %v766 = vpop.f32.mrb[0].mxu0
      %v767 = vpop.f32.mrb[0].mxu0
      %v768 = vadd.f32 %v681, %v767
      %v769 = vpop.f32.mrb[0].mxu0
      %770 = vdwg.mxu0
      %v771 = vmax.f32 %v765, 0.0
      %v772 = vmax.f32 %v768, 0.0
      %v773 = vld [vmem:[#allocation17 + $0x2] ss:$0 sm:$0xff]
      %v774 = vmul.f32 %v771, %v773
      %v775 = vmul.f32 %v772, %v773
      %v776 = vld [vmem:[#allocation17 + $0x3] ss:$0 sm:$0xff]
      %v777 = vadd.f32 %v774, %v776
      %v778 = vadd.f32 %v775, %v776
      %779 = vst.msk [vmem:[#allocation19] sm:$0xff] %vm661, %v777
      %780 = vst.msk [vmem:[#allocation19 + $0x8] sm:$0xff] %vm661, %v778
    $region61: #{tpu_custom_call.1} parent=1 // pred_fallthru
      _
    // Predicated region
    $region62: #{tpu_custom_call.1} parent=1 // pred_check
      _
    $region63: #{tpu_custom_call.1} parent=1 // pred_check_branch
      %782 = sbr.rel (0) target = $region65
    $region64: #{tpu_custom_call.1} parent=1 // pred_region
      %s784 = ssub.s32 256, 256
      %785 = vsyncadd [#allocation10], %s784
      %s786 = sshll.u32 [#allocation19], 4
      %s787 = int_to_ptr.vmem [resolvable:$true] %s786
      %792 = dma.vmem_to_hbm [thread:$0]  %s787, 256, %s7, [#allocation10], 128, 128, 8
    $region65: #{tpu_custom_call.1} parent=1 // pred_fallthru
      _
    // Predicated region
    $region66: #{tpu_custom_call.1} parent=1 // pred_check
      _
    $region67: #{tpu_custom_call.1} parent=1 // pred_check_branch
      %794 = sbr.rel (0) target = $region69
    $region68: #{tpu_custom_call.1} parent=1 // pred_region
      %795 = dma.done [#allocation10], 256
    $region69: #{tpu_custom_call.1} parent=1 // pred_fallthru
      _
    %796 = vsyncpa [#allocation9], 1
    %797 = vsyncpa [#allocation12], 1
    %798 = vsyncpa [#allocation15], 1
    %799 = vsyncpa [#allocation18], 1
    %800 = vsyncpa [#allocation10], 1

</llo_original>
